<compile_context>
chip_gen: v6e
topology: v6e:2x2x1
jax: 0.10.0
libtpu: 0.0.40
codegen_flags: <defaults>
</compile_context>

<pallas_src>
import functools

import jax
import jax.numpy as jnp
import numpy as np
from jax.experimental import pallas as pl
from jax.experimental.pallas import tpu as pltpu

_K = 7  # conv kernel size
_P = 3  # SAME padding for k=7


def _round_up(v, m):
    return (v + m - 1) // m * m


def _physical_vmem_bytes():
    try:
        info = pltpu.get_tpu_info()
        for attr in ("vmem_capacity_bytes", "vmem_size_bytes", "vmem_bytes"):
            v = getattr(info, attr, None)
            if v:
                return int(v)
    except Exception:
        pass
    try:
        kind = jax.devices()[0].device_kind.lower()
        if "v7" in kind:
            return 64 << 20
        if any(t in kind for t in ("v4", "v5", "v6")):
            return 128 << 20
    except Exception:
        pass
    return 64 << 20  # conservative default


@functools.lru_cache(maxsize=None)
def _vmem_budget_bytes():
    # ~3/4 of physical VMEM: ~96 MiB on v5e/v6e, ~48 MiB on v7x.
    return (_physical_vmem_bytes() * 3) // 4


@functools.lru_cache(maxsize=None)
def _roll_shift_sign():
    """Probe the hardware rotate direction of pltpu.roll once so the conv is
    robust to either convention (jnp.roll-like: out[j] = in[j - shift])."""
    def probe(x_ref, o_ref):
        o_ref[...] = pltpu.roll(x_ref[...], 1, axis=1)

    x = jnp.tile(jnp.arange(128, dtype=jnp.float32), (8, 1))
    y = pl.pallas_call(
        probe, out_shape=jax.ShapeDtypeStruct((8, 128), jnp.float32))(x)
    y0 = float(np.asarray(jax.block_until_ready(y))[0, 0])
    # jnp.roll convention: y[0, 0] == x[0, 127] == 127; reversed: y[0, 0] == 1.
    return 1 if y0 > 64.0 else -1


def _conv7x7_bn_sigmoid(w_ref, planes, *, H, W, w_pad, roll_sign):
    """7x7 (2->1) conv + folded-BN bias + sigmoid on zero-padded pooled planes.

    planes: two (h_pad, w_pad) f32 zero-padded planes (max-pool, mean-pool);
            rows [_P, _P+H) / cols [0, W) hold data, the rest is zero, with
            >= _P zero rows below and >= _P zero cols to the right so that
            lane-roll wrap-around lands in zeros (no per-tap masks).
    Horizontal shifts are hoisted: one pltpu.roll per (plane, kw) = 14 rolls
    total; vertical shifts are cheap sublane row slices.  Shift-and-accumulate
    runs on the VPU; the sigmoid on the EUP.  Kept off the MXU deliberately.
    """
    acc = jnp.zeros((H, w_pad), jnp.float32)
    for c, plane in enumerate(planes):
        rolled = []
        for kw in range(_K):
            dw = kw - _P
            if dw == 0:
                rolled.append(plane)
            else:
                rolled.append(
                    pltpu.roll(plane, ((-dw) * roll_sign) % w_pad, axis=1))
        for kh in range(_K):
            for kw in range(_K):
                w = w_ref[c * _K * _K + kh * _K + kw]
                acc = acc + w * rolled[kw][kh:kh + H, :]
    return jax.nn.sigmoid(acc[:, :W] + w_ref[2 * _K * _K])


def _fused_kernel(w_ref, x_ref, o_ref, pmax_sc, pmean_sc, scale_sc, *,
                  C, H, W, w_pad, roll_sign):
    """One batch element per grid step: pool -> conv -> sigmoid -> x * scale.

    w_ref     : SMEM (2*49 + 1,) f32 folded conv weights + folded BN bias.
    x_ref     : VMEM (1, C, H*W) input block (lane dense).
    o_ref     : VMEM (1, C, H*W) output block.
    pmax_sc, pmean_sc : VMEM (h_pad, w_pad) f32 zero-padded conv planes.
    scale_sc  : VMEM (1, H*W) f32 flat scale plane.
    """
    xb = x_ref[0]                                              # (C, HW)

    # Channel pooling, lane dense.  Max is exact in the input dtype; the mean
    # accumulates in f32.
    pmax = jnp.max(xb, axis=0, keepdims=True).astype(jnp.float32)      # (1, HW)
    pmean = jnp.sum(xb.astype(jnp.float32), axis=0, keepdims=True) * (1.0 / C)

    # Scatter the flat pooled rows into the zero-padded 2-D planes (per-row
    # slice stores; H is a small static bound for CBAM spatial maps).
    pmax_sc[...] = jnp.zeros_like(pmax_sc)
    pmean_sc[...] = jnp.zeros_like(pmean_sc)
    for r in range(H):
        pmax_sc[_P + r:_P + r + 1, 0:W] = pmax[:, r * W:(r + 1) * W]
        pmean_sc[_P + r:_P + r + 1, 0:W] = pmean[:, r * W:(r + 1) * W]

    sig = _conv7x7_bn_sigmoid(w_ref, (pmax_sc[...], pmean_sc[...]),
                              H=H, W=W, w_pad=w_pad, roll_sign=roll_sign)

    # Back to the lane-dense flat layout for the gating multiply.
    for r in range(H):
        scale_sc[0:1, r * W:(r + 1) * W] = sig[r:r + 1, :]

    o_ref[0] = x_ref[0] * scale_sc[...].astype(o_ref.dtype)


def _pool_conv_kernel(w_ref, x_ref, s_ref, max_sc, sum_sc, pmax_sc, pmean_sc, *,
                      C, H, W, w_pad, roll_sign):
    """Fallback pass 1: lane-dense pooling accumulated over C tiles; the conv +
    BN + sigmoid run once per batch element on the last C step."""
    ct = pl.program_id(1)

    @pl.when(ct == 0)
    def _init():
        max_sc[...] = jnp.full_like(max_sc, -jnp.inf)
        sum_sc[...] = jnp.zeros_like(sum_sc)

    xb = x_ref[0]                                              # (c_tile, HW)
    max_sc[...] = jnp.maximum(
        max_sc[...], jnp.max(xb, axis=0, keepdims=True).astype(jnp.float32))
    sum_sc[...] = sum_sc[...] + jnp.sum(
        xb.astype(jnp.float32), axis=0, keepdims=True)

    @pl.when(ct == pl.num_programs(1) - 1)
    def _finalize():
        pmax_sc[...] = jnp.zeros_like(pmax_sc)
        pmean_sc[...] = jnp.zeros_like(pmean_sc)
        pmax = max_sc[...]
        pmean = sum_sc[...] * (1.0 / C)
        for r in range(H):
            pmax_sc[_P + r:_P + r + 1, 0:W] = pmax[:, r * W:(r + 1) * W]
            pmean_sc[_P + r:_P + r + 1, 0:W] = pmean[:, r * W:(r + 1) * W]
        sig = _conv7x7_bn_sigmoid(w_ref, (pmax_sc[...], pmean_sc[...]),
                                  H=H, W=W, w_pad=w_pad, roll_sign=roll_sign)
        for r in range(H):
            s_ref[0:1, 0:1, r * W:(r + 1) * W] = sig[None, r:r + 1, :]


def _apply_scale_kernel(s_ref, x_ref, o_ref):
    """Fallback pass 2: o = x * scale on a lane-dense (c_tile2, H*W) block."""
    o_ref[0] = x_ref[0] * s_ref[0].astype(o_ref.dtype)


def _lane_block_bytes(c, HW, dtype_bytes):
    return _round_up(max(c, 1), 8) * _round_up(HW, 128) * dtype_bytes


def _pick_c_tile(C, HW, dtype_bytes, target_bytes):
    """Largest channel tile that is a multiple of 8 (or C itself) dividing C
    whose lane-dense block stays under target_bytes."""
    if C < 8 or _lane_block_bytes(C, HW, dtype_bytes) <= target_bytes:
        return C
    fits = [d for d in range(8, C, 8)
            if C % d == 0 and _lane_block_bytes(d, HW, dtype_bytes) <= target_bytes]
    if fits:
        return max(fits)
    div8 = [d for d in range(8, C, 8) if C % d == 0]
    return min(div8) if div8 else C


def spatial_gate_pallas(x, w_flat, *, c_tile=None, c_tile2=None,
                        force_two_pass=False):
    """x: (N, C, H, W); w_flat: (2*49 + 1,) f32 folded conv weights + BN bias."""
    N, C, H, W = x.shape
    HW = H * W
    h_pad = _round_up(H + 2 * _P, 8)
    w_pad = _round_up(W + _P, 128)
    roll_sign = _roll_shift_sign()
    dtype_bytes = jnp.dtype(x.dtype).itemsize
    vmem_cap = int(_vmem_budget_bytes())

    x_flat = x.reshape(N, C, HW)       # contiguous NCHW reshape: free in XLA
    smem_spec = pl.BlockSpec(memory_space=pltpu.MemorySpace.SMEM)
    pad_scratch = [pltpu.VMEM((h_pad, w_pad), jnp.float32),
                   pltpu.VMEM((h_pad, w_pad), jnp.float32)]
    pad_scratch_bytes = 2 * h_pad * w_pad * 4 + 8 * _round_up(HW, 128) * 4

    # ---- fused single pass: x read from HBM once, written once -------------
    slab_bytes = _lane_block_bytes(C, HW, dtype_bytes)
    fused_need = 4 * slab_bytes + pad_scratch_bytes + (4 << 20)
    if not force_two_pass and fused_need <= vmem_cap:
        kernel = functools.partial(_fused_kernel, C=C, H=H, W=W,
                                   w_pad=w_pad, roll_sign=roll_sign)
        out = pl.pallas_call(
            kernel,
            out_shape=jax.ShapeDtypeStruct((N, C, HW), x.dtype),
            grid_spec=pltpu.PrefetchScalarGridSpec(
                num_scalar_prefetch=0,
                grid=(N,),
                in_specs=[smem_spec,
                          pl.BlockSpec((1, C, HW), lambda n: (n, 0, 0))],
                out_specs=pl.BlockSpec((1, C, HW), lambda n: (n, 0, 0)),
                scratch_shapes=pad_scratch + [pltpu.VMEM((1, HW), jnp.float32)]),
            compiler_params=pltpu.CompilerParams(
                dimension_semantics=("parallel",),
                vmem_limit_bytes=vmem_cap),
        )(w_flat, x_flat)
        return out.reshape(N, C, H, W)

    # ---- fallback: two passes, C-tiled, lane dense --------------------------
    if c_tile is None:
        c_tile = _pick_c_tile(C, HW, dtype_bytes, max(vmem_cap // 12, 2 << 20))
    assert C % c_tile == 0 and (c_tile % 8 == 0 or c_tile == C), (C, c_tile)
    if c_tile2 is None:
        c_tile2 = _pick_c_tile(C, HW, dtype_bytes, max(vmem_cap // 6, 4 << 20))
    assert C % c_tile2 == 0 and (c_tile2 % 8 == 0 or c_tile2 == C), (C, c_tile2)

    kernel1 = functools.partial(_pool_conv_kernel, C=C, H=H, W=W,
                                w_pad=w_pad, roll_sign=roll_sign)
    scale = pl.pallas_call(
        kernel1,
        out_shape=jax.ShapeDtypeStruct((N, 1, HW), jnp.float32),
        grid_spec=pltpu.PrefetchScalarGridSpec(
            num_scalar_prefetch=0,
            grid=(N, C // c_tile),
            in_specs=[smem_spec,
                      pl.BlockSpec((1, c_tile, HW), lambda n, c: (n, c, 0))],
            out_specs=pl.BlockSpec((1, 1, HW), lambda n, c: (n, 0, 0)),
            scratch_shapes=[pltpu.VMEM((1, HW), jnp.float32),
                            pltpu.VMEM((1, HW), jnp.float32)] + pad_scratch),
        compiler_params=pltpu.CompilerParams(
            dimension_semantics=("parallel", "arbitrary"),
            vmem_limit_bytes=vmem_cap),
    )(w_flat, x_flat)

    out = pl.pallas_call(
        _apply_scale_kernel,
        out_shape=jax.ShapeDtypeStruct((N, C, HW), x.dtype),
        grid_spec=pltpu.PrefetchScalarGridSpec(
            num_scalar_prefetch=0,
            grid=(N, C // c_tile2),
            in_specs=[pl.BlockSpec((1, 1, HW), lambda n, c: (n, 0, 0)),
                      pl.BlockSpec((1, c_tile2, HW), lambda n, c: (n, c, 0))],
            out_specs=pl.BlockSpec((1, c_tile2, HW), lambda n, c: (n, c, 0))),
        compiler_params=pltpu.CompilerParams(
            dimension_semantics=("parallel", "parallel"),
            vmem_limit_bytes=vmem_cap),
    )(scale, x_flat)
    return out.reshape(N, C, H, W)


def fold_params(conv_w, gamma, beta, rmean, rvar, eps=1e-5):
    """Fold eval-mode BatchNorm2d(1) into the conv weights + a bias scalar."""
    s = gamma / jnp.sqrt(rvar + eps)                          # (1,)
    w_eff = (conv_w * s.reshape(1, 1, 1, 1)).reshape(-1)      # (2*7*7,) order (c, kh, kw)
    b_eff = (beta - rmean * s).reshape(-1)                    # (1,)
    return jnp.concatenate([w_eff, b_eff]).astype(jnp.float32)


def spatial_gate_ref(x, conv_w, gamma, beta, rmean, rvar, eps=1e-5):
    """Pure-JAX reference (for verification)."""
    cmax = jnp.max(x, axis=1, keepdims=True)
    cmean = jnp.mean(x, axis=1, keepdims=True)
    xc = jnp.concatenate([cmax, cmean], axis=1)               # (N, 2, H, W)
    out = jax.lax.conv_general_dilated(
        xc, conv_w, window_strides=(1, 1), padding=((3, 3), (3, 3)),
        dimension_numbers=("NCHW", "OIHW", "NCHW"))
    s = gamma.reshape(1, -1, 1, 1)
    out = s * (out - rmean.reshape(1, -1, 1, 1)) / jnp.sqrt(
        rvar.reshape(1, -1, 1, 1) + eps) + beta.reshape(1, -1, 1, 1)
    return x * jax.nn.sigmoid(out)


if __name__ == "__main__":
    key = jax.random.PRNGKey(0)
    kx, kw, kg, kb, km, kv, kx2 = jax.random.split(key, 7)

    # Deterministic synthetic parameters (shapes match SpatialGate.__init__).
    conv_w = 0.1 * jax.random.normal(kw, (1, 2, 7, 7), dtype=jnp.float32)  # Conv2d(2,1,7)
    gamma = 1.0 + 0.1 * jax.random.normal(kg, (1,), dtype=jnp.float32)     # BN weight
    beta = 0.1 * jax.random.normal(kb, (1,), dtype=jnp.float32)            # BN bias
    rmean = 0.05 * jax.random.normal(km, (1,), dtype=jnp.float32)          # running_mean
    rvar = 1.0 + 0.1 * jax.nn.softplus(jax.random.normal(kv, (1,)))        # running_var > 0
    rvar = rvar.astype(jnp.float32)
    w_flat = fold_params(conv_w, gamma, beta, rmean, rvar)

    # Case 1: small module-consistent shape -> fused single-pass path.
    N, C, H, W = 2, 4, 16, 16
    x = jax.random.normal(kx, (N, C, H, W), dtype=jnp.float32)
    out = jax.block_until_ready(spatial_gate_pallas(x, w_flat))
    ref = jax.block_until_ready(
        spatial_gate_ref(x, conv_w, gamma, beta, rmean, rvar))
    np.testing.assert_allclose(np.asarray(out), np.asarray(ref),
                               atol=1e-4, rtol=1e-4)

    # Case 2: exercise the two-pass C-tiled fallback (2 channel tiles).
    x2 = jax.random.normal(kx2, (2, 16, 16, 16), dtype=jnp.float32)
    out2 = jax.block_until_ready(
        spatial_gate_pallas(x2, w_flat, c_tile=8, force_two_pass=True))
    ref2 = jax.block_until_ready(
        spatial_gate_ref(x2, conv_w, gamma, beta, rmean, rvar))
    np.testing.assert_allclose(np.asarray(out2), np.asarray(ref2),
                               atol=1e-4, rtol=1e-4)

    print("KERNEL_OK")
</pallas_src>

<mosaic_0001>
module attributes {stable_mosaic.version = 11 : i64} {
  func.func @probe(%arg0: memref<8x128xf32, #tpu.memory_space<vmem>>, %arg1: memref<8x128xf32, #tpu.memory_space<vmem>>) attributes {dimension_semantics = [], scalar_prefetch = 0 : i64, scratch_operands = 0 : i64, tpu.core_type = #tpu.core_type<tc>} {
    %c0 = arith.constant 0 : index
    %c0_0 = arith.constant 0 : index
    %0 = vector.load %arg0[%c0, %c0_0] : memref<8x128xf32, #tpu.memory_space<vmem>>, vector<8x128xf32>
    %c1_i32 = arith.constant 1 : i32
    %1 = tpu.dynamic_rotate %0 by %c1_i32 dim 1 : vector<8x128xf32>, i32 -> vector<8x128xf32>
    %c0_1 = arith.constant 0 : index
    %c0_2 = arith.constant 0 : index
    %2 = vector.load %arg1[%c0_1, %c0_2] : memref<8x128xf32, #tpu.memory_space<vmem>>, vector<8x128xf32>
    tpu.vector_store %arg1[%c0_1, %c0_2], %1 {strides = array<i32>} : memref<8x128xf32, #tpu.memory_space<vmem>>, vector<8x128xf32>,
    return
  }
}

</mosaic_0001>

<llo_original>
// kernel: tpu_custom_call.1
$region0: #{tpu_custom_call.1}
  #allocation0 [shape = 'u32[]', space=smem, size = 0x4, offset = 0x4, fixed_abs, tag = 'smem constant byte address 0x4 - core index']
  #allocation1 [shape = 'u32[144,128]{1,0:T(1,128)}', space=vmem, size = 0x12000, scoped, tag = 'internal scratch']
  %s0 = inlined_call_operand.hbm [shape: f32[8,128], index: 0, kind: input, shape index: {}]
  %s1 = inlined_call_operand.hbm [shape: f32[8,128], index: 1, kind: output, shape index: {}]
  %s2 = sld [smem:[#allocation0]]
  $region18: #{tpu_custom_call.1} parent=0
    _
  %s4 = ssub.s32 1, %s2
  %s5 = scalar_select 0, %s4, %s2
  $region1: #{tpu_custom_call.1} parent=0
    #allocation2 [shape = 'u8[4096]{0}', space=vmem, size = 0x1000, scoped, tag = 'input window, operand 0, single buffered']
    #allocation3 [shape = 's32[1]{0}', space=sflag, size = 0x4, scoped, tag = 'scoped memory for tpu_custom_call.1']
    #allocation4 [shape = 's32[1]{0}', space=sflag, size = 0x4, scoped, tag = 'scoped memory for tpu_custom_call.1']
    #allocation5 [shape = 'u8[4096]{0}', space=vmem, size = 0x1000, scoped, tag = 'output window, operand 0, single buffered']
    %6 = vsyncpa [#allocation3], 0
    %7 = vsyncpa [#allocation4], 0
    // Predicated region
    $region2: #{tpu_custom_call.1} parent=1 // pred_check
      _
    $region3: #{tpu_custom_call.1} parent=1 // pred_check_branch
      %9 = sbr.rel (0) target = $region5
    $region4: #{tpu_custom_call.1} parent=1 // pred_region
      %s11 = ssub.s32 128, 128
      %12 = vsyncadd [#allocation3], %s11
      %s14 = sshll.u32 [#allocation2], 4
      %s15 = int_to_ptr.vmem [resolvable:$true] %s14
      %17 = dma.hbm_to_vmem [thread:$0]  %s0, 128, %s15, [#allocation3]
    $region5: #{tpu_custom_call.1} parent=1 // pred_fallthru
      _
    // Predicated region
    $region6: #{tpu_custom_call.1} parent=1 // pred_check
      _
    $region7: #{tpu_custom_call.1} parent=1 // pred_check_branch
      %19 = sbr.rel (0) target = $region9
    $region8: #{tpu_custom_call.1} parent=1 // pred_region
      %20 = dma.done [#allocation3], 128
    $region9: #{tpu_custom_call.1} parent=1 // pred_fallthru
      _
    %v21 = vld [vmem:[#allocation2] sm:$0xff]
    %22 = vrot.lane.b32.xlu0 %v21, 1
    %v23 = vpop.permute.xlu0 %22
    %24 = vst [vmem:[#allocation5] sm:$0xff] %v23
    // Predicated region
    $region10: #{tpu_custom_call.1} parent=1 // pred_check
      _
    $region11: #{tpu_custom_call.1} parent=1 // pred_check_branch
      %26 = sbr.rel (0) target = $region13
    $region12: #{tpu_custom_call.1} parent=1 // pred_region
      %s28 = ssub.s32 128, 128
      %29 = vsyncadd [#allocation4], %s28
      %s31 = sshll.u32 [#allocation5], 4
      %s32 = int_to_ptr.vmem [resolvable:$true] %s31
      %34 = dma.vmem_to_hbm [thread:$0]  %s32, 128, %s1, [#allocation4]
    $region13: #{tpu_custom_call.1} parent=1 // pred_fallthru
      _
    // Predicated region
    $region14: #{tpu_custom_call.1} parent=1 // pred_check
      _
    $region15: #{tpu_custom_call.1} parent=1 // pred_check_branch
      %36 = sbr.rel (0) target = $region17
    $region16: #{tpu_custom_call.1} parent=1 // pred_region
      %37 = dma.done [#allocation4], 128
    $region17: #{tpu_custom_call.1} parent=1 // pred_fallthru
      _
    %38 = vsyncpa [#allocation3], 1
    %39 = vsyncpa [#allocation4], 1

</llo_original>
